<compile_context>
chip_gen: v7x
topology: tpu7x:2x2x1
jax: 0.10.0
libtpu: 0.0.40
codegen_flags: <defaults>
</compile_context>

<pallas_src>
import functools

import jax
import jax.numpy as jnp
from jax.experimental import pallas as pl
from jax.experimental.pallas import tpu as pltpu


def _round_up(a, m):
    return (a + m - 1) // m * m


# ------------------------------------------------------------------ pass 1 --
def _pool_gate_kernel(x_ref, w1t_ref, b1_ref, w2t_ref, b2_ref, g_ref, acc_ref,
                      *, inv_hw):
    """Accumulate per-channel sums over HW tiles; finalize gate on last tile."""
    t = pl.program_id(1)

    @pl.when(t == 0)
    def _():
        acc_ref[...] = jnp.zeros_like(acc_ref)

    # (B_blk, C, T_hw) -> (B_blk, C) partial sums, accumulated in f32.
    acc_ref[...] += jnp.sum(x_ref[...].astype(jnp.float32), axis=-1)

    @pl.when(t == pl.num_programs(1) - 1)
    def _():
        pooled = acc_ref[...] * inv_hw                              # (B_blk, C)
        # fc1 (1x1 conv, C -> Cr) + ReLU, as a batched matmul.
        h = jnp.dot(pooled, w1t_ref[...],
                    preferred_element_type=jnp.float32) + b1_ref[...]
        h = jnp.maximum(h, 0.0)                                     # (B_blk, Cr)
        # fc2 (1x1 conv, Cr -> C) + Sigmoid.
        y = jnp.dot(h, w2t_ref[...],
                    preferred_element_type=jnp.float32) + b2_ref[...]
        y = jax.nn.sigmoid(y)                                       # (B_blk, C)
        g_ref[...] = y[:, :, None]                                  # (B_blk, C, 1)


# ------------------------------------------------------------------ pass 2 --
def _scale_kernel(g_ref, x_ref, o_ref):
    """o = x * gate, computed in the storage dtype of x (no f32 upcast)."""
    o_ref[...] = x_ref[...] * g_ref[...].astype(x_ref.dtype)


def ca_layer(x, w1, b1, w2, b2, *, tile_bytes=2 * 1024 * 1024):
    """CALayer forward.

    x: (B, C, H, W) NCHW; w1: (Cr, C); b1: (Cr,); w2: (C, Cr); b2: (C,).
    """
    B, C, H, W = x.shape
    HW = H * W
    Cr = w1.shape[0]
    itemsize = jnp.dtype(x.dtype).itemsize

    # --- tile selection ------------------------------------------------------
    hw128 = _round_up(HW, 128)              # lane-dense spatial extent
    row_bytes = C * hw128 * itemsize        # one image's (C, HW) slab
    if row_bytes <= tile_bytes:
        # Small spatial extent: batch several images per grid step.
        T_hw = hw128
        B_blk = max(1, min(B, tile_bytes // row_bytes))
    else:
        # Large spatial extent: one image per step, tile HW lane-densely.
        B_blk = 1
        T_hw = max(128, (tile_bytes // (C * itemsize)) // 128 * 128)
        T_hw = min(T_hw, hw128)

    HW_pad = _round_up(HW, T_hw)
    B_pad = _round_up(B, B_blk)

    xf = x.reshape(B, C, HW)
    if HW_pad != HW or B_pad != B:
        xf = jnp.pad(xf, ((0, B_pad - B), (0, 0), (0, HW_pad - HW)))

    # Pre-transpose the 1x1-conv weights so the kernel matmuls are
    # (B_blk, C) @ (C, Cr) and (B_blk, Cr) @ (Cr, C) with no in-kernel T.
    w1t = w1.T                       # (C, Cr)
    w2t = w2.T                       # (Cr, C)
    b1r = b1.reshape(1, Cr)
    b2r = b2.reshape(1, C)

    nb = B_pad // B_blk
    nt = HW_pad // T_hw
    vmem_limit = 48 * 1024 * 1024    # safe on v5e/v6e (128 MiB) and v7x (64 MiB)

    # ----- pass 1: pooled mean -> fc1 -> relu -> fc2 -> sigmoid (gate) -------
    gate = pl.pallas_call(
        functools.partial(_pool_gate_kernel, inv_hw=1.0 / HW),
        out_shape=jax.ShapeDtypeStruct((B_pad, C, 1), jnp.float32),
        grid_spec=pltpu.PrefetchScalarGridSpec(
            num_scalar_prefetch=0,
            grid=(nb, nt),
            in_specs=[
                pl.BlockSpec((B_blk, C, T_hw), lambda b, t: (b, 0, t)),  # x
                pl.BlockSpec((C, Cr),          lambda b, t: (0, 0)),     # w1.T
                pl.BlockSpec((1, Cr),          lambda b, t: (0, 0)),     # b1
                pl.BlockSpec((Cr, C),          lambda b, t: (0, 0)),     # w2.T
                pl.BlockSpec((1, C),           lambda b, t: (0, 0)),     # b2
            ],
            out_specs=pl.BlockSpec((B_blk, C, 1), lambda b, t: (b, 0, 0)),
            scratch_shapes=[pltpu.VMEM((B_blk, C), jnp.float32)],
        ),
        compiler_params=pltpu.CompilerParams(
            dimension_semantics=("parallel", "arbitrary"),
            vmem_limit_bytes=vmem_limit),
    )(xf, w1t, b1r, w2t, b2r)

    # ----- pass 2: elementwise channel rescale (lane-dense tiles) ------------
    out = pl.pallas_call(
        _scale_kernel,
        out_shape=jax.ShapeDtypeStruct((B_pad, C, HW_pad), x.dtype),
        grid_spec=pltpu.PrefetchScalarGridSpec(
            num_scalar_prefetch=0,
            grid=(nb, nt),
            in_specs=[
                pl.BlockSpec((B_blk, C, 1),    lambda b, t: (b, 0, 0)),  # gate
                pl.BlockSpec((B_blk, C, T_hw), lambda b, t: (b, 0, t)),  # x
            ],
            out_specs=pl.BlockSpec((B_blk, C, T_hw), lambda b, t: (b, 0, t)),
        ),
        compiler_params=pltpu.CompilerParams(
            dimension_semantics=("parallel", "parallel"),
            vmem_limit_bytes=vmem_limit),
    )(gate, xf)

    if HW_pad != HW or B_pad != B:
        out = out[:B, :, :HW]
    return out.reshape(B, C, H, W)


def ca_layer_ref(x, w1, b1, w2, b2):
    """Pure-JAX reference mirroring the PyTorch CALayer forward."""
    pooled = jnp.mean(x, axis=(2, 3))                       # (B, C)
    h = jnp.maximum(pooled @ w1.T + b1, 0.0)                # (B, Cr)
    y = jax.nn.sigmoid(h @ w2.T + b2)                       # (B, C)
    return x * y[:, :, None, None]


if __name__ == "__main__":
    key = jax.random.PRNGKey(0)

    def make_case(k, B, C, H, W, reduction):
        Cr = max(1, C // reduction)
        kx, k1, k2, k3, k4 = jax.random.split(k, 5)
        x = jax.random.normal(kx, (B, C, H, W), dtype=jnp.float32)
        w1 = 0.1 * jax.random.normal(k1, (Cr, C), dtype=jnp.float32)
        b1 = 0.1 * jax.random.normal(k2, (Cr,), dtype=jnp.float32)
        w2 = 0.1 * jax.random.normal(k3, (C, Cr), dtype=jnp.float32)
        b2 = 0.1 * jax.random.normal(k4, (C,), dtype=jnp.float32)
        return x, w1, b1, w2, b2

    ka, kb, kc = jax.random.split(key, 3)

    # Case 1: small HW -> multiple batch elements per grid step.
    args = make_case(ka, 2, 32, 16, 16, 16)
    out = jax.block_until_ready(ca_layer(*args))
    ref = ca_layer_ref(*args)
    assert out.shape == args[0].shape
    assert jnp.allclose(out, ref, atol=1e-5, rtol=1e-5), "case 1 mismatch"

    # Case 2: HW not a multiple of 128 and B not a multiple of the batch
    # block -> exercises lane/batch padding paths.
    args = make_case(kb, 3, 16, 9, 9, 4)
    out = jax.block_until_ready(ca_layer(*args, tile_bytes=16 * 1024))
    ref = ca_layer_ref(*args)
    assert out.shape == args[0].shape
    assert jnp.allclose(out, ref, atol=1e-5, rtol=1e-5), "case 2 mismatch"

    # Case 3: tiny tile budget -> multi-step HW reduction via the accumulator.
    args = make_case(kc, 2, 32, 16, 16, 16)
    out = jax.block_until_ready(ca_layer(*args, tile_bytes=16 * 1024))
    ref = ca_layer_ref(*args)
    assert out.shape == args[0].shape
    assert jnp.allclose(out, ref, atol=1e-5, rtol=1e-5), "case 3 mismatch"

    print("KERNEL_OK")
</pallas_src>

<mosaic_0001>
module attributes {stable_mosaic.version = 11 : i64} {
  func.func @_pool_gate_kernel(%arg0: i32, %arg1: i32, %arg2: memref<2x32x256xf32, #tpu.memory_space<vmem>>, %arg3: memref<32x2xf32, #tpu.memory_space<vmem>>, %arg4: memref<1x2xf32, #tpu.memory_space<vmem>>, %arg5: memref<2x32xf32, #tpu.memory_space<vmem>>, %arg6: memref<1x32xf32, #tpu.memory_space<vmem>>, %arg7: memref<2x32x1xf32, #tpu.memory_space<vmem>>, %arg8: memref<2x32xf32, #tpu.memory_space<vmem>>) attributes {dimension_semantics = [#tpu.dimension_semantics<parallel>, #tpu.dimension_semantics<arbitrary>], iteration_bounds = array<i64: 1, 1>, scalar_prefetch = 0 : i64, scratch_operands = 1 : i64, tpu.core_type = #tpu.core_type<tc>, window_params = [{transform_indices = @transform_0, window_bounds = array<i64: 2, 32, 256>}, {pipeline_mode = #tpu.pipeline_mode<synchronous>, transform_indices = @transform_1, window_bounds = array<i64: 32, 2>}, {pipeline_mode = #tpu.pipeline_mode<synchronous>, transform_indices = @transform_2, window_bounds = array<i64: 1, 2>}, {pipeline_mode = #tpu.pipeline_mode<synchronous>, transform_indices = @transform_3, window_bounds = array<i64: 2, 32>}, {pipeline_mode = #tpu.pipeline_mode<synchronous>, transform_indices = @transform_4, window_bounds = array<i64: 1, 32>}, {transform_indices = @transform_5, window_bounds = array<i64: 2, 32, 1>}]} {
    %c0_i32 = arith.constant 0 : i32
    %0 = arith.cmpi eq, %arg1, %c0_i32 : i32
    %1 = arith.extui %0 : i1 to i32
    %c0_i32_0 = arith.constant 0 : i32
    %2 = arith.cmpi ne, %1, %c0_i32_0 : i32
    scf.if %2 {
      %cst_9 = arith.constant 0.000000e+00 : f32
      %11 = vector.broadcast %cst_9 : f32 to vector<2x32xf32>
      %c0_10 = arith.constant 0 : index
      %c0_11 = arith.constant 0 : index
      %12 = vector.load %arg8[%c0_10, %c0_11] : memref<2x32xf32, #tpu.memory_space<vmem>>, vector<2x32xf32>
      tpu.vector_store %arg8[%c0_10, %c0_11], %11 {strides = array<i32>} : memref<2x32xf32, #tpu.memory_space<vmem>>, vector<2x32xf32>,
    } else {
    }
    %c0 = arith.constant 0 : index
    %c0_1 = arith.constant 0 : index
    %3 = vector.load %arg8[%c0, %c0_1] : memref<2x32xf32, #tpu.memory_space<vmem>>, vector<2x32xf32>
    %c0_2 = arith.constant 0 : index
    %c0_3 = arith.constant 0 : index
    %c0_4 = arith.constant 0 : index
    %4 = vector.load %arg2[%c0_2, %c0_3, %c0_4] : memref<2x32x256xf32, #tpu.memory_space<vmem>>, vector<2x32x256xf32>
    %cst = arith.constant dense<0.000000e+00> : vector<2x32xf32>
    %5 = vector.multi_reduction <add>, %4, %cst [2] : vector<2x32x256xf32> to vector<2x32xf32>
    %6 = arith.addf %3, %5 : vector<2x32xf32>
    %c0_5 = arith.constant 0 : index
    %c0_6 = arith.constant 0 : index
    %7 = vector.load %arg8[%c0_5, %c0_6] : memref<2x32xf32, #tpu.memory_space<vmem>>, vector<2x32xf32>
    tpu.vector_store %arg8[%c0_5, %c0_6], %6 {strides = array<i32>} : memref<2x32xf32, #tpu.memory_space<vmem>>, vector<2x32xf32>,
    %c0_i32_7 = arith.constant 0 : i32
    %8 = arith.cmpi eq, %arg1, %c0_i32_7 : i32
    %9 = arith.extui %8 : i1 to i32
    %c0_i32_8 = arith.constant 0 : i32
    %10 = arith.cmpi ne, %9, %c0_i32_8 : i32
    scf.if %10 {
      %c0_9 = arith.constant 0 : index
      %c0_10 = arith.constant 0 : index
      %11 = vector.load %arg8[%c0_9, %c0_10] : memref<2x32xf32, #tpu.memory_space<vmem>>, vector<2x32xf32>
      %cst_11 = arith.constant 3.906250e-03 : f32
      %12 = vector.broadcast %cst_11 : f32 to vector<2x32xf32>
      %13 = arith.mulf %11, %12 : vector<2x32xf32>
      %c0_12 = arith.constant 0 : index
      %c0_13 = arith.constant 0 : index
      %14 = vector.load %arg3[%c0_12, %c0_13] : memref<32x2xf32, #tpu.memory_space<vmem>>, vector<32x2xf32>
      %cst_14 = arith.constant dense<0.000000e+00> : vector<2x2xf32>
      %15 = tpu.matmul %13, %14, %cst_14 {dimension_numbers = #tpu.dot_dimension_numbers<[1], [0], [0], [1], [0, 0, 1, 1], [], []>} : vector<2x32xf32>, vector<32x2xf32>, vector<2x2xf32> -> vector<2x2xf32>
      %c0_15 = arith.constant 0 : index
      %c0_16 = arith.constant 0 : index
      %16 = vector.load %arg4[%c0_15, %c0_16] : memref<1x2xf32, #tpu.memory_space<vmem>>, vector<1x2xf32>
      %17 = vector.broadcast %16 : vector<1x2xf32> to vector<2x2xf32>
      %18 = arith.addf %15, %17 : vector<2x2xf32>
      %cst_17 = arith.constant 0.000000e+00 : f32
      %19 = vector.broadcast %cst_17 : f32 to vector<2x2xf32>
      %20 = arith.maximumf %18, %19 : vector<2x2xf32>
      %c0_18 = arith.constant 0 : index
      %c0_19 = arith.constant 0 : index
      %21 = vector.load %arg5[%c0_18, %c0_19] : memref<2x32xf32, #tpu.memory_space<vmem>>, vector<2x32xf32>
      %cst_20 = arith.constant dense<0.000000e+00> : vector<2x32xf32>
      %22 = tpu.matmul %20, %21, %cst_20 {dimension_numbers = #tpu.dot_dimension_numbers<[1], [0], [0], [1], [0, 0, 1, 1], [], []>} : vector<2x2xf32>, vector<2x32xf32>, vector<2x32xf32> -> vector<2x32xf32>
      %c0_21 = arith.constant 0 : index
      %c0_22 = arith.constant 0 : index
      %23 = vector.load %arg6[%c0_21, %c0_22] : memref<1x32xf32, #tpu.memory_space<vmem>>, vector<1x32xf32>
      %24 = vector.broadcast %23 : vector<1x32xf32> to vector<2x32xf32>
      %25 = arith.addf %22, %24 : vector<2x32xf32>
      %26 = arith.negf %25 : vector<2x32xf32>
      %27 = math.exp %26 : vector<2x32xf32>
      %cst_23 = arith.constant 1.000000e+00 : f32
      %28 = vector.broadcast %cst_23 : f32 to vector<2x32xf32>
      %29 = arith.addf %28, %27 : vector<2x32xf32>
      %30 = arith.divf %28, %29 : vector<2x32xf32>
      %31 = vector.shape_cast %30 : vector<2x32xf32> to vector<2x32x1xf32>
      %c0_24 = arith.constant 0 : index
      %c0_25 = arith.constant 0 : index
      %c0_26 = arith.constant 0 : index
      %32 = vector.load %arg7[%c0_24, %c0_25, %c0_26] : memref<2x32x1xf32, #tpu.memory_space<vmem>>, vector<2x32x1xf32>
      tpu.vector_store %arg7[%c0_24, %c0_25, %c0_26], %31 {strides = array<i32>} : memref<2x32x1xf32, #tpu.memory_space<vmem>>, vector<2x32x1xf32>,
    } else {
    }
    return
  }
  func.func @transform_0(%arg0: i32, %arg1: i32) -> (i32, i32, i32) {
    %c0_i32 = arith.constant 0 : i32
    %c0_i32_0 = arith.constant 0 : i32
    return %arg0, %c0_i32, %arg1 : i32, i32, i32
  }
  func.func @transform_1(%arg0: i32, %arg1: i32) -> (i32, i32) {
    %c0_i32 = arith.constant 0 : i32
    %c0_i32_0 = arith.constant 0 : i32
    %c0_i32_1 = arith.constant 0 : i32
    return %c0_i32, %c0_i32_0 : i32, i32
  }
  func.func @transform_2(%arg0: i32, %arg1: i32) -> (i32, i32) {
    %c0_i32 = arith.constant 0 : i32
    %c0_i32_0 = arith.constant 0 : i32
    %c0_i32_1 = arith.constant 0 : i32
    return %c0_i32, %c0_i32_0 : i32, i32
  }
  func.func @transform_3(%arg0: i32, %arg1: i32) -> (i32, i32) {
    %c0_i32 = arith.constant 0 : i32
    %c0_i32_0 = arith.constant 0 : i32
    %c0_i32_1 = arith.constant 0 : i32
    return %c0_i32, %c0_i32_0 : i32, i32
  }
  func.func @transform_4(%arg0: i32, %arg1: i32) -> (i32, i32) {
    %c0_i32 = arith.constant 0 : i32
    %c0_i32_0 = arith.constant 0 : i32
    %c0_i32_1 = arith.constant 0 : i32
    return %c0_i32, %c0_i32_0 : i32, i32
  }
  func.func @transform_5(%arg0: i32, %arg1: i32) -> (i32, i32, i32) {
    %c0_i32 = arith.constant 0 : i32
    %c0_i32_0 = arith.constant 0 : i32
    %c0_i32_1 = arith.constant 0 : i32
    return %arg0, %c0_i32, %c0_i32_0 : i32, i32, i32
  }
}

</mosaic_0001>

<llo_original>
// kernel: tpu_custom_call.1
$region0: #{tpu_custom_call.1}
  #allocation0 [shape = 'u32[]', space=smem, size = 0x4, offset = 0x4, fixed_abs, tag = 'smem constant byte address 0x4 - core index']
  #allocation1 [shape = 'u32[144,128]{1,0:T(1,128)}', space=vmem, size = 0x12000, scoped, tag = 'internal scratch']
  #allocation2 [shape = 'f32[2,32]{1,0:T(2,128)}', space=vmem, size = 0x400, scoped, tag = 'scratch operand']
  %s0 = inlined_call_operand.hbm [shape: f32[2,32,256], index: 0, kind: input, shape index: {}]
  %s1 = inlined_call_operand.vmem [shape: f32[32,2], index: 1, kind: input, shape index: {}]
  %s2 = inlined_call_operand.vmem [shape: f32[1,2], index: 2, kind: input, shape index: {}]
  %s3 = inlined_call_operand.vmem [shape: f32[2,32], index: 3, kind: input, shape index: {}]
  %s4 = inlined_call_operand.vmem [shape: f32[1,32], index: 4, kind: input, shape index: {}]
  %s5 = inlined_call_operand.vmem [shape: f32[2,32,1], index: 5, kind: output, shape index: {}]
  %s6 = sld [smem:[#allocation0]]
  $region42: #{tpu_custom_call.1} parent=0
    _
  %s8 = ssub.s32 1, %s6
  %s9 = scalar_select 0, %s8, %s6
  $region1: #{tpu_custom_call.1} parent=0
    #allocation3 [shape = 'u8[65536]{0}', space=vmem, size = 0x10000, scoped, tag = 'input window, operand 0, single buffered']
    #allocation4 [shape = 's32[1]{0}', space=sflag, size = 0x4, scoped, tag = 'scoped memory for tpu_custom_call.1']
    %10 = vsyncpa [#allocation4], 0
    // Predicated region
    $region2: #{tpu_custom_call.1} parent=1 // pred_check
      _
    $region3: #{tpu_custom_call.1} parent=1 // pred_check_branch
      %12 = sbr.rel (0) target = $region5
    $region4: #{tpu_custom_call.1} parent=1 // pred_region
      %s14 = ssub.s32 2048, 2048
      %15 = vsyncadd [#allocation4], %s14
      %s16 = sshll.u32 [#allocation3], 4
      %s17 = int_to_ptr.vmem [resolvable:$true] %s16
      %22 = dma.hbm_to_vmem [thread:$0]  %s0, 2048, %s17, [#allocation4], 256, 256, 16
    $region5: #{tpu_custom_call.1} parent=1 // pred_fallthru
      _
    // Predicated region
    $region6: #{tpu_custom_call.1} parent=1 // pred_check
      _
    $region7: #{tpu_custom_call.1} parent=1 // pred_check_branch
      %24 = sbr.rel (0) target = $region9
    $region8: #{tpu_custom_call.1} parent=1 // pred_region
      _
    $region9: #{tpu_custom_call.1} parent=1 // pred_fallthru
      _
    // Predicated region
    $region10: #{tpu_custom_call.1} parent=1 // pred_check
      _
    $region11: #{tpu_custom_call.1} parent=1 // pred_check_branch
      %26 = sbr.rel (0) target = $region13
    $region12: #{tpu_custom_call.1} parent=1 // pred_region
      _
    $region13: #{tpu_custom_call.1} parent=1 // pred_fallthru
      _
    // Predicated region
    $region14: #{tpu_custom_call.1} parent=1 // pred_check
      _
    $region15: #{tpu_custom_call.1} parent=1 // pred_check_branch
      %28 = sbr.rel (0) target = $region17
    $region16: #{tpu_custom_call.1} parent=1 // pred_region
      _
    $region17: #{tpu_custom_call.1} parent=1 // pred_fallthru
      _
    // Predicated region
    $region18: #{tpu_custom_call.1} parent=1 // pred_check
      _
    $region19: #{tpu_custom_call.1} parent=1 // pred_check_branch
      %30 = sbr.rel (0) target = $region21
    $region20: #{tpu_custom_call.1} parent=1 // pred_region
      _
    $region21: #{tpu_custom_call.1} parent=1 // pred_fallthru
      _
    // Predicated region
    $region22: #{tpu_custom_call.1} parent=1 // pred_check
      _
    $region23: #{tpu_custom_call.1} parent=1 // pred_check_branch
      %32 = sbr.rel (0) target = $region25
    $region24: #{tpu_custom_call.1} parent=1 // pred_region
      %33 = dma.done [#allocation4], 2048
    $region25: #{tpu_custom_call.1} parent=1 // pred_fallthru
      _
    %p34 = scmp.eq.s32.totalorder 0, 0
    // Predicated region
    $region26: #{tpu_custom_call.1} parent=1 // pred_check
      %p35 = pneg %p34
    $region27: #{tpu_custom_call.1} parent=1 // pred_check_branch
      %37 = sbr.rel (%p35) target = $region29
    $region28: #{tpu_custom_call.1} parent=1 // pred_region
      %vm38 = vcmask 254976
      %39 = vst.msk [vmem:[#allocation2] sm:$0x3] %vm38, 0.0
    $region29: #{tpu_custom_call.1} parent=1 // pred_fallthru
      _
    %v40 = vld [vmem:[#allocation2] sm:$0x3]
    %v41 = vld [vmem:[#allocation3] sm:$0xff]
    %v42 = vld [vmem:[#allocation3 + $0x8] sm:$0xff]
    %v43 = vld [vmem:[#allocation3 + $0x10] sm:$0xff]
    %v44 = vld [vmem:[#allocation3 + $0x18] sm:$0xff]
    %v45 = vld [vmem:[#allocation3 + $0x20] sm:$0xff]
    %v46 = vld [vmem:[#allocation3 + $0x28] sm:$0xff]
    %v47 = vld [vmem:[#allocation3 + $0x30] sm:$0xff]
    %v48 = vld [vmem:[#allocation3 + $0x38] sm:$0xff]
    %v49 = vld [vmem:[#allocation3 + $0x40] sm:$0xff]
    %v50 = vld [vmem:[#allocation3 + $0x48] sm:$0xff]
    %v51 = vld [vmem:[#allocation3 + $0x50] sm:$0xff]
    %v52 = vld [vmem:[#allocation3 + $0x58] sm:$0xff]
    %v53 = vld [vmem:[#allocation3 + $0x60] sm:$0xff]
    %v54 = vld [vmem:[#allocation3 + $0x68] sm:$0xff]
    %v55 = vld [vmem:[#allocation3 + $0x70] sm:$0xff]
    %v56 = vld [vmem:[#allocation3 + $0x78] sm:$0xff]
    %v57 = vadd.f32 %v41, %v42
    %58 = vadd.xlane.f32.xlu0 %v57
    %v59 = vpop.xlane.xlu0 %58
    %v60 = vadd.f32 %v43, %v44
    %61 = vadd.xlane.f32.xlu0 %v60
    %v62 = vpop.xlane.xlu0 %61
    %v63 = vadd.f32 %v45, %v46
    %64 = vadd.xlane.f32.xlu0 %v63
    %v65 = vpop.xlane.xlu0 %64
    %v66 = vadd.f32 %v47, %v48
    %67 = vadd.xlane.f32.xlu0 %v66
    %v68 = vpop.xlane.xlu0 %67
    %v69 = vadd.f32 %v49, %v50
    %70 = vadd.xlane.f32.xlu0 %v69
    %v71 = vpop.xlane.xlu0 %70
    %v72 = vadd.f32 %v51, %v52
    %73 = vadd.xlane.f32.xlu0 %v72
    %v74 = vpop.xlane.xlu0 %73
    %v75 = vadd.f32 %v53, %v54
    %76 = vadd.xlane.f32.xlu0 %v75
    %v77 = vpop.xlane.xlu0 %76
    %v78 = vadd.f32 %v55, %v56
    %79 = vadd.xlane.f32.xlu0 %v78
    %v80 = vpop.xlane.xlu0 %79
    %v89 = vlaneseq
    %v90 = vand.u32 %v89, 127
    %v91 = vlaneseq
    %v92 = vshrl.u32 %v91, 7
    %v93 = vsub.s32 %v90, %v92
    %v94 = vrot.slane %v59, %v93
    %v95 = vadd.s32 %v90, 4294967288
    %v96 = vlaneseq
    %v97 = vshrl.u32 %v96, 7
    %v98 = vsub.s32 %v95, %v97
    %v99 = vrot.slane %v62, %v98
    %vm100 = vcmask 130112
    %v101 = vsel %vm100, %v99, %v94
    %v102 = vadd.s32 %v90, 4294967280
    %v103 = vlaneseq
    %v104 = vshrl.u32 %v103, 7
    %v105 = vsub.s32 %v102, %v104
    %v106 = vrot.slane %v65, %v105
    %vm107 = vcmask 195712
    %v108 = vsel %vm107, %v106, %v101
    %v109 = vadd.s32 %v90, 4294967272
    %v110 = vlaneseq
    %v111 = vshrl.u32 %v110, 7
    %v112 = vsub.s32 %v109, %v111
    %v113 = vrot.slane %v68, %v112
    %vm114 = vcmask 261312
    %v115 = vsel %vm114, %v113, %v108
    %v116 = vlaneseq
    %v117 = vshrl.u32 %v116, 7
    %v118 = vsub.s32 %v90, %v117
    %v119 = vrot.slane %v71, %v118
    %v120 = vlaneseq
    %v121 = vshrl.u32 %v120, 7
    %v122 = vsub.s32 %v95, %v121
    %v123 = vrot.slane %v74, %v122
    %v124 = vsel %vm100, %v123, %v119
    %v125 = vlaneseq
    %v126 = vshrl.u32 %v125, 7
    %v127 = vsub.s32 %v102, %v126
    %v128 = vrot.slane %v77, %v127
    %v129 = vsel %vm107, %v128, %v124
    %v130 = vlaneseq
    %v131 = vshrl.u32 %v130, 7
    %v132 = vsub.s32 %v109, %v131
    %v133 = vrot.slane %v80, %v132
    %v134 = vsel %vm114, %v133, %v129
    %vm135 = vcmask 1041409
    %v136 = vsel %vm135, %v134, %v115
    %v138 = vadd.f32 %v40, %v136
    %vm139 = vcmask 254976
    %140 = vst.msk [vmem:[#allocation2] sm:$0x3] %vm139, %v138
    // Predicated region
    $region30: #{tpu_custom_call.1} parent=1 // pred_check
      %p141 = pneg %p34
    $region31: #{tpu_custom_call.1} parent=1 // pred_check_branch
      %143 = sbr.rel (%p141) target = $region33
    $region32: #{tpu_custom_call.1} parent=1 // pred_region
      %v144 = vld [vmem:[#allocation2] sm:$0x3]
      %v145 = vmul.f32 %v144, 0.00390625
      %v146 = vld [vmem:[%s1] sm:$0xff]
      %v147 = vld [vmem:[%s1 + $0x8] sm:$0xff]
      %v148 = vld [vmem:[%s1 + $0x10] sm:$0xff]
      %v149 = vld [vmem:[%s1 + $0x18] sm:$0xff]
      %v150 = vld [vmem:[%s2] sm:$0x1]
      %v152 = vlaneseq
      %v153 = vshrl.u32 %v152, 7
      %v154 = vsub.s32 0, %v153
      %v155 = vrot.slane %v150, %v154
      %vm157 = vcmask 261120
      %v159 = vsel %vm157, %v145, 0
      %161 = vmatprep.subr.mxu0 0.0
      %162 = vmatpush1.msra.mxu0 %v146
      %163 = vmatprep.subr.mxu0 0.0
      %164 = vmatpush1.msra.mxu0 %v147
      %165 = vmatprep.subr.mxu0 0.0
      %166 = vmatpush1.msra.mxu0 %v148
      %167 = vmatprep.subr.mxu0 0.0
      %168 = vmatpush1.msra.mxu0 %v149
      %169 = vmatprep.subr.mxu0 0.0
      %170 = vmatpush1.msra.mxu0 0.0
      %171 = vmatprep.subr.mxu0 0.0
      %172 = vmatpush1.msra.mxu0 0.0
      %173 = vmatprep.subr.mxu0 0.0
      %174 = vmatpush1.msra.mxu0 0.0
      %175 = vmatprep.subr.mxu0 0.0
      %176 = vmatpush1.msra.mxu0 0.0
      %177 = vmatprep.subr.mxu0 0.0
      %178 = vmatpush1.msra.mxu0 0.0
      %179 = vmatprep.subr.mxu0 0.0
      %180 = vmatpush1.msra.mxu0 0.0
      %181 = vmatprep.subr.mxu0 0.0
      %182 = vmatpush1.msra.mxu0 0.0
      %183 = vmatprep.subr.mxu0 0.0
      %184 = vmatpush1.msra.mxu0 0.0
      %185 = vmatprep.subr.mxu0 0.0
      %186 = vmatpush1.msra.mxu0 0.0
      %187 = vmatprep.subr.mxu0 0.0
      %188 = vmatpush1.msra.mxu0 0.0
      %189 = vmatprep.subr.mxu0 0.0
      %190 = vmatpush1.msra.mxu0 0.0
      %191 = vmatprep.subr.mxu0 0.0
      %192 = vmatpush1.msra.mxu0 0.0
      %193 = vmatprep.subr.mxu0 0.0
      %194 = vmatpush1.msra.mxu0 0.0
      %195 = vmatprep.subr.mxu0 0.0
      %196 = vmatpush1.msra.mxu0 0.0
      %197 = vmatprep.subr.mxu0 0.0
      %198 = vmatpush1.msra.mxu0 0.0
      %199 = vmatprep.subr.mxu0 0.0
      %200 = vmatpush1.msra.mxu0 0.0
      %201 = vmatprep.subr.mxu0 0.0
      %202 = vmatpush1.msra.mxu0 0.0
      %203 = vmatprep.subr.mxu0 0.0
      %204 = vmatpush1.msra.mxu0 0.0
      %205 = vmatprep.subr.mxu0 0.0
      %206 = vmatpush1.msra.mxu0 0.0
      %207 = vmatprep.subr.mxu0 0.0
      %208 = vmatpush1.msra.mxu0 0.0
      %209 = vmatprep.subr.mxu0 0.0
      %210 = vmatpush1.msra.mxu0 0.0
      %211 = vmatprep.subr.mxu0 0.0
      %212 = vmatpush1.msra.mxu0 0.0
      %213 = vmatprep.subr.mxu0 0.0
      %214 = vmatpush1.msra.mxu0 0.0
      %215 = vmatprep.subr.mxu0 0.0
      %216 = vmatpush1.msra.mxu0 0.0
      %217 = vmatprep.subr.mxu0 0.0
      %218 = vmatpush1.msra.mxu0 0.0
      %219 = vmatprep.subr.mxu0 0.0
      %220 = vmatpush1.msra.mxu0 0.0
      %221 = vmatprep.subr.mxu0 0.0
      %222 = vmatpush1.msra.mxu0 0.0
      %223 = vmatprep.subr.mxu0 0.0
      %224 = vmatpush1.msra.mxu0 0.0
      %225 = vmatprep.mubr.f32.mxu0 0.0
      %226 = vmatmul.mubr.f32.gmra.mrb[0].mxu0 %v159
      %v227 = vpop.f32.mrb[0].mxu0
      %v228 = vadd.f32 %v155, %v227
      %v229 = vpop.f32.mrb[0].mxu0
      %230 = vdwg.mxu0
      %v231 = vmax.f32 %v228, 0.0
      %v232 = vld [vmem:[%s3] sm:$0x3]
      %v233 = vld [vmem:[%s4] sm:$0x1]
      %v235 = vlaneseq
      %v236 = vshrl.u32 %v235, 7
      %v237 = vsub.s32 0, %v236
      %v238 = vrot.slane %v233, %v237
      %vm240 = vcmask 15360
      %v242 = vsel %vm240, %v231, 0
      %vm244 = vcmask 1041408
      %v246 = vsel %vm244, %v232, 0
      %248 = vmatprep.subr.mxu0 0.0
      %249 = vmatpush1.msra.mxu0 %v246
      %250 = vmatprep.subr.mxu0 0.0
      %251 = vmatpush1.msra.mxu0 0.0
      %252 = vmatprep.subr.mxu0 0.0
      %253 = vmatpush1.msra.mxu0 0.0
      %254 = vmatprep.subr.mxu0 0.0
      %255 = vmatpush1.msra.mxu0 0.0
      %256 = vmatprep.subr.mxu0 0.0
      %257 = vmatpush1.msra.mxu0 0.0
      %258 = vmatprep.subr.mxu0 0.0
      %259 = vmatpush1.msra.mxu0 0.0
      %260 = vmatprep.subr.mxu0 0.0
      %261 = vmatpush1.msra.mxu0 0.0
      %262 = vmatprep.subr.mxu0 0.0
      %263 = vmatpush1.msra.mxu0 0.0
      %264 = vmatprep.subr.mxu0 0.0
      %265 = vmatpush1.msra.mxu0 0.0
      %266 = vmatprep.subr.mxu0 0.0
      %267 = vmatpush1.msra.mxu0 0.0
      %268 = vmatprep.subr.mxu0 0.0
      %269 = vmatpush1.msra.mxu0 0.0
      %270 = vmatprep.subr.mxu0 0.0
      %271 = vmatpush1.msra.mxu0 0.0
      %272 = vmatprep.subr.mxu0 0.0
      %273 = vmatpush1.msra.mxu0 0.0
      %274 = vmatprep.subr.mxu0 0.0
      %275 = vmatpush1.msra.mxu0 0.0
      %276 = vmatprep.subr.mxu0 0.0
      %277 = vmatpush1.msra.mxu0 0.0
      %278 = vmatprep.subr.mxu0 0.0
      %279 = vmatpush1.msra.mxu0 0.0
      %280 = vmatprep.subr.mxu0 0.0
      %281 = vmatpush1.msra.mxu0 0.0
      %282 = vmatprep.subr.mxu0 0.0
      %283 = vmatpush1.msra.mxu0 0.0
      %284 = vmatprep.subr.mxu0 0.0
      %285 = vmatpush1.msra.mxu0 0.0
      %286 = vmatprep.subr.mxu0 0.0
      %287 = vmatpush1.msra.mxu0 0.0
      %288 = vmatprep.subr.mxu0 0.0
      %289 = vmatpush1.msra.mxu0 0.0
      %290 = vmatprep.subr.mxu0 0.0
      %291 = vmatpush1.msra.mxu0 0.0
      %292 = vmatprep.subr.mxu0 0.0
      %293 = vmatpush1.msra.mxu0 0.0
      %294 = vmatprep.subr.mxu0 0.0
      %295 = vmatpush1.msra.mxu0 0.0
      %296 = vmatprep.subr.mxu0 0.0
      %297 = vmatpush1.msra.mxu0 0.0
      %298 = vmatprep.subr.mxu0 0.0
      %299 = vmatpush1.msra.mxu0 0.0
      %300 = vmatprep.subr.mxu0 0.0
      %301 = vmatpush1.msra.mxu0 0.0
      %302 = vmatprep.subr.mxu0 0.0
      %303 = vmatpush1.msra.mxu0 0.0
      %304 = vmatprep.subr.mxu0 0.0
      %305 = vmatpush1.msra.mxu0 0.0
      %306 = vmatprep.subr.mxu0 0.0
      %307 = vmatpush1.msra.mxu0 0.0
      %308 = vmatprep.subr.mxu0 0.0
      %309 = vmatpush1.msra.mxu0 0.0
      %310 = vmatprep.subr.mxu0 0.0
      %311 = vmatpush1.msra.mxu0 0.0
      %312 = vmatprep.mubr.f32.mxu0 0.0
      %313 = vmatmul.mubr.f32.gmra.mrb[0].mxu0 %v242
      %v314 = vpop.f32.mrb[0].mxu0
      %v315 = vadd.f32 %v238, %v314
      %v316 = vpop.f32.mrb[0].mxu0
      %317 = vdwg.mxu0
      %v318 = vxor.u32 %v315, 2147483648
      %v319 = vmul.f32 %v318, 1.442695
      %v320 = vpow.pop %v319
      %v321 = vadd.f32 %v320, 1.0
      %v322 = vrcp.pop %v321
      %v323 = vmul.f32 1.0, %v322
      %v324 = vlaneseq
      %v325 = vshrl.u32 %v324, 7
      %v326 = vsub.s32 0, %v325
      %v327 = vrot.slane %v323, %v326
      %329 = vbcast.lane.b32.xlu0 %v327, 256
      %v330 = vpop.permute.xlu0 %329
      %s332 = sor.u32 256, 8
      %333 = vbcast.lane.b32.xlu0 %v327, %s332
      %v334 = vpop.permute.xlu0 %333
      %s336 = sor.u32 256, 16
      %337 = vbcast.lane.b32.xlu0 %v327, %s336
      %v338 = vpop.permute.xlu0 %337
      %s340 = sor.u32 256, 24
      %341 = vbcast.lane.b32.xlu0 %v327, %s340
      %v342 = vpop.permute.xlu0 %341
      %v343 = vlaneseq
      %v344 = vshrl.u32 %v343, 7
      %v345 = vsub.s32 1, %v344
      %v346 = vrot.slane %v323, %v345
      %348 = vbcast.lane.b32.xlu0 %v346, 256
      %v349 = vpop.permute.xlu0 %348
      %s351 = sor.u32 256, 8
      %352 = vbcast.lane.b32.xlu0 %v346, %s351
      %v353 = vpop.permute.xlu0 %352
      %s355 = sor.u32 256, 16
      %356 = vbcast.lane.b32.xlu0 %v346, %s355
      %v357 = vpop.permute.xlu0 %356
      %s359 = sor.u32 256, 24
      %360 = vbcast.lane.b32.xlu0 %v346, %s359
      %v361 = vpop.permute.xlu0 %360
      %vm362 = vcmask 7168
      %363 = vst.msk [vmem:[%s5] sm:$0xff] %vm362, %v330
      %364 = vst.msk [vmem:[%s5 + $0x8] sm:$0xff] %vm362, %v334
      %365 = vst.msk [vmem:[%s5 + $0x10] sm:$0xff] %vm362, %v338
      %366 = vst.msk [vmem:[%s5 + $0x18] sm:$0xff] %vm362, %v342
      %367 = vst.msk [vmem:[%s5 + $0x20] sm:$0xff] %vm362, %v349
      %368 = vst.msk [vmem:[%s5 + $0x28] sm:$0xff] %vm362, %v353
      %369 = vst.msk [vmem:[%s5 + $0x30] sm:$0xff] %vm362, %v357
      %370 = vst.msk [vmem:[%s5 + $0x38] sm:$0xff] %vm362, %v361
    $region33: #{tpu_custom_call.1} parent=1 // pred_fallthru
      _
    // Predicated region
    $region34: #{tpu_custom_call.1} parent=1 // pred_check
      _
    $region35: #{tpu_custom_call.1} parent=1 // pred_check_branch
      %372 = sbr.rel (0) target = $region37
    $region36: #{tpu_custom_call.1} parent=1 // pred_region
      _
    $region37: #{tpu_custom_call.1} parent=1 // pred_fallthru
      _
    // Predicated region
    $region38: #{tpu_custom_call.1} parent=1 // pred_check
      _
    $region39: #{tpu_custom_call.1} parent=1 // pred_check_branch
      %374 = sbr.rel (0) target = $region41
    $region40: #{tpu_custom_call.1} parent=1 // pred_region
      _
    $region41: #{tpu_custom_call.1} parent=1 // pred_fallthru
      _
    %375 = vsyncpa [#allocation4], 1

</llo_original>
